<compile_context>
chip_gen: v7x
topology: tpu7x:2x2x1
jax: 0.10.0
libtpu: 0.0.40
codegen_flags: <defaults>
</compile_context>

<pallas_src>
import jax
import jax.numpy as jnp
from jax import lax
from jax.experimental import pallas as pl
from jax.experimental.pallas import tpu as pltpu


def _round_up(x, m):
    return ((x + m - 1) // m) * m


def _bembedding_bag_kernel(idx_ref, off_ref, noff_ref, inv_ref, w_ref, out_ref,
                           counts_ref):
    """Bag aggregation as two MXU matmuls.

    idx_ref    : VMEM i32  (Np, 1)   flat token ids (padded tail positions are
                                     excluded by the bag-membership matrix)
    off_ref    : VMEM i32  (TB, 1)   bag start offsets for this batch tile
    noff_ref   : VMEM i32  (TB, 1)   bag end offsets (next offset, last bag -> N)
    inv_ref    : VMEM f32  (TB, 1)   per-bag output scale (1/len for mean, 1 for sum,
                                     0 for empty bags)
    w_ref      : VMEM bf16 (Ep, TD)  prepared table tile (0/1 or ±1, pad row handled)
    out_ref    : VMEM f32  (TB, TD)  aggregated embeddings
    counts_ref : VMEM bf16 (TB, Ep)  per-bag token multiplicities (scratch, reused
                                     across the D grid axis)
    """
    tb = off_ref.shape[0]
    np_ = idx_ref.shape[0]
    ep = w_ref.shape[0]

    # The per-bag token-count matrix is independent of the D tile: build it once
    # per batch tile (d == 0) on the MXU and keep it in scratch across all D tiles.
    @pl.when(pl.program_id(1) == 0)
    def _():
        pos = lax.broadcasted_iota(jnp.int32, (tb, np_), 1)          # (TB, Np)
        seg = (pos >= off_ref[...]) & (pos < noff_ref[...])          # bag membership
        eid = lax.broadcasted_iota(jnp.int32, (np_, ep), 1)          # (Np, Ep)
        onehot = idx_ref[...] == eid                                 # token one-hot
        # counts are small integers -> exact in bf16 (up to 256 repeats per bag).
        counts_ref[...] = jnp.dot(seg.astype(jnp.bfloat16),
                                  onehot.astype(jnp.bfloat16),
                                  preferred_element_type=jnp.float32
                                  ).astype(jnp.bfloat16)

    # (TB, Ep) @ (Ep, TD) on the MXU, f32 accumulation. The table already encodes
    # padding (zeroed / -1 row) and the sign transform (0/1 -> ±1), so this IS the
    # per-bag sum of transformed rows; the broadcast multiply applies mean scaling.
    acc = jnp.dot(counts_ref[...], w_ref[...],
                  preferred_element_type=jnp.float32)                # (TB, TD) f32
    out_ref[...] = acc * inv_ref[...]


def bembedding_bag_forward(indices, offsets, weight_bool, *,
                           padding_idx=None, sign_bool=False, mode="mean"):
    """JAX wrapper mirroring BEmbeddingBag.forward(indices, offsets)."""
    assert mode in ("mean", "sum")
    indices = indices.reshape(-1).astype(jnp.int32)
    offsets = offsets.reshape(-1).astype(jnp.int32)
    n = indices.shape[0]
    b = offsets.shape[0]
    e, d = weight_bool.shape

    # --- table prep: hoists padding + sign transforms out of the hot path ------
    w = weight_bool.astype(jnp.float32)
    if padding_idx is not None:
        w = w.at[padding_idx].set(0.0)       # gather of the pad row -> zeros
    if sign_bool:
        w = 2.0 * w - 1.0                    # 0 -> -1, 1 -> 1 (pad row -> all -1,
                                             # same order as bitorch: pad then sign)
    # bf16 is exact for {-1, 0, 1}; halves HBM/VMEM traffic vs f32 and drives the
    # bf16 MXU path on every generation (v7x has no integer MXU modes).
    w = w.astype(jnp.bfloat16)

    # --- pad to TPU-friendly shapes --------------------------------------------
    np_ = _round_up(max(n, 1), 128)          # token axis (contraction of matmul #1)
    ep = _round_up(e, 128)                   # vocab axis (contraction of matmul #2)
    dp = _round_up(d, 128)
    td = 512 if dp > 512 else dp             # lane tile, multiple of 128
    dp = _round_up(dp, td)
    tb = min(_round_up(b, 8), 128)           # sublane-dense bag tile
    bp = _round_up(b, tb)
    nb, nd = bp // tb, dp // td

    idx_p = jnp.zeros((np_,), jnp.int32).at[:n].set(indices).reshape(np_, 1)
    off_p = jnp.full((bp,), n, jnp.int32).at[:b].set(offsets).reshape(bp, 1)
    next_off = jnp.concatenate([offsets[1:], jnp.array([n], jnp.int32)])
    noff_p = jnp.full((bp,), n, jnp.int32).at[:b].set(next_off).reshape(bp, 1)

    # per-bag output scale: 1/len for mean (0 for empty bags), 1 for sum.
    cnt = (noff_p - off_p).astype(jnp.float32)
    if mode == "mean":
        inv_p = jnp.where(cnt > 0.0, 1.0 / jnp.maximum(cnt, 1.0), 0.0)
    else:
        inv_p = jnp.ones_like(cnt)

    w_p = jnp.zeros((ep, dp), jnp.bfloat16).at[:e, :d].set(w)

    out = pl.pallas_call(
        _bembedding_bag_kernel,
        out_shape=jax.ShapeDtypeStruct((bp, dp), jnp.float32),
        grid_spec=pltpu.PrefetchScalarGridSpec(
            num_scalar_prefetch=0,
            grid=(nb, nd),                                    # (batch tiles, D tiles)
            in_specs=[
                pl.BlockSpec((np_, 1), lambda i, j: (0, 0)),  # token ids
                pl.BlockSpec((tb, 1), lambda i, j: (i, 0)),   # bag starts
                pl.BlockSpec((tb, 1), lambda i, j: (i, 0)),   # bag ends
                pl.BlockSpec((tb, 1), lambda i, j: (i, 0)),   # per-bag scale
                pl.BlockSpec((ep, td), lambda i, j: (0, j)),  # table, D-tiled
            ],
            out_specs=pl.BlockSpec((tb, td), lambda i, j: (i, j)),
            scratch_shapes=[pltpu.VMEM((tb, ep), jnp.bfloat16)],   # per-bag counts
        ),
        compiler_params=pltpu.CompilerParams(
            dimension_semantics=("parallel", "arbitrary"),
            vmem_limit_bytes=32 * 1024 * 1024,
        ),
    )(idx_p, off_p, noff_p, inv_p, w_p)

    # torch does out.reshape((batch_size, -1)).
    return out[:b, :d].reshape(b, -1)


def _reference(indices, offsets, weight_bool, *, padding_idx, sign_bool, mode):
    """Plain-JAX reference implementing the same torch semantics."""
    w = weight_bool.astype(jnp.float32)
    rows = w[indices]
    if padding_idx is not None:
        rows = jnp.where((indices == padding_idx)[:, None], 0.0, rows)
    if sign_bool:
        rows = jnp.where(rows == 0.0, -1.0, rows)
    batch_size = offsets.shape[0]
    n = indices.shape[0]
    outs = []
    for bb in range(batch_size):
        s = int(offsets[bb])
        e = int(offsets[bb + 1]) if bb < batch_size - 1 else n
        seg = rows[s:e]
        if e > s:
            outs.append(seg.mean(axis=0) if mode == "mean" else seg.sum(axis=0))
        else:
            outs.append(jnp.zeros(w.shape[1], jnp.float32))
    return jnp.stack(outs)


if __name__ == "__main__":
    key = jax.random.PRNGKey(0)
    k_w, k_idx, k_w3, k_i3 = jax.random.split(key, 4)

    # ---------------- config 1: mean + sign_bool + padding (bitorch path) -------
    num_embeddings, embedding_dim, batch_size, n_indices, padding_idx = 32, 128, 4, 10, 2
    # torch init: Parameter(torch.rand((E, D)) > 0.5) -> boolean table
    weight_bool = jax.random.uniform(k_w, (num_embeddings, embedding_dim)) > 0.5
    indices = jax.random.randint(k_idx, (n_indices,), 0, num_embeddings, dtype=jnp.int32)
    indices = indices.at[1].set(padding_idx)          # make sure the padding path is hit
    offsets = jnp.array([0, 3, 6, 8], dtype=jnp.int32)

    out = bembedding_bag_forward(indices, offsets, weight_bool,
                                 padding_idx=padding_idx, sign_bool=True, mode="mean")
    out = jax.block_until_ready(out)
    ref = _reference(indices, offsets, weight_bool,
                     padding_idx=padding_idx, sign_bool=True, mode="mean")
    assert out.shape == (batch_size, embedding_dim), out.shape
    assert jnp.allclose(out, ref, atol=1e-5), (out, ref)

    # ---------------- config 2: plain sum, no sign, no padding ------------------
    out2 = bembedding_bag_forward(indices, offsets, weight_bool,
                                  padding_idx=None, sign_bool=False, mode="sum")
    out2 = jax.block_until_ready(out2)
    ref2 = _reference(indices, offsets, weight_bool,
                      padding_idx=None, sign_bool=False, mode="sum")
    assert jnp.allclose(out2, ref2, atol=1e-5), (out2, ref2)

    # ---------------- config 3: exercises the D-tile grid axis + empty bag ------
    e3, d3, n3 = 96, 640, 37
    wb3 = jax.random.uniform(k_w3, (e3, d3)) > 0.5
    idx3 = jax.random.randint(k_i3, (n3,), 0, e3, dtype=jnp.int32)
    off3 = jnp.array([0, 5, 5, 11, 20, 30], dtype=jnp.int32)   # bag 1 is empty
    out3 = bembedding_bag_forward(idx3, off3, wb3,
                                  padding_idx=1, sign_bool=True, mode="mean")
    out3 = jax.block_until_ready(out3)
    ref3 = _reference(idx3, off3, wb3, padding_idx=1, sign_bool=True, mode="mean")
    assert out3.shape == (6, d3), out3.shape
    assert jnp.allclose(out3, ref3, atol=1e-5), (out3, ref3)

    print("KERNEL_OK")
</pallas_src>

<mosaic_0001>
module attributes {stable_mosaic.version = 11 : i64} {
  func.func @_bembedding_bag_kernel(%arg0: i32, %arg1: i32, %arg2: memref<128x1xi32, #tpu.memory_space<vmem>>, %arg3: memref<8x1xi32, #tpu.memory_space<vmem>>, %arg4: memref<8x1xi32, #tpu.memory_space<vmem>>, %arg5: memref<8x1xf32, #tpu.memory_space<vmem>>, %arg6: memref<128x128xbf16, #tpu.memory_space<vmem>>, %arg7: memref<8x128xf32, #tpu.memory_space<vmem>>, %arg8: memref<8x128xbf16, #tpu.memory_space<vmem>>) attributes {dimension_semantics = [#tpu.dimension_semantics<parallel>, #tpu.dimension_semantics<arbitrary>], iteration_bounds = array<i64: 1, 1>, scalar_prefetch = 0 : i64, scratch_operands = 1 : i64, tpu.core_type = #tpu.core_type<tc>, window_params = [{pipeline_mode = #tpu.pipeline_mode<synchronous>, transform_indices = @transform_0, window_bounds = array<i64: 128, 1>}, {transform_indices = @transform_1, window_bounds = array<i64: 8, 1>}, {transform_indices = @transform_2, window_bounds = array<i64: 8, 1>}, {transform_indices = @transform_3, window_bounds = array<i64: 8, 1>}, {transform_indices = @transform_4, window_bounds = array<i64: 128, 128>}, {transform_indices = @transform_5, window_bounds = array<i64: 8, 128>}]} {
    %c0_i32 = arith.constant 0 : i32
    %0 = arith.cmpi eq, %arg1, %c0_i32 : i32
    %1 = arith.extui %0 : i1 to i32
    %c0_i32_0 = arith.constant 0 : i32
    %2 = arith.cmpi ne, %1, %c0_i32_0 : i32
    scf.if %2 {
      %10 = tpu.iota {dimensions = array<i32: 1>} : vector<8x128xi32>
      %c0_8 = arith.constant 0 : index
      %c0_9 = arith.constant 0 : index
      %11 = vector.load %arg3[%c0_8, %c0_9] : memref<8x1xi32, #tpu.memory_space<vmem>>, vector<8x1xi32>
      %12 = vector.broadcast %11 : vector<8x1xi32> to vector<8x128xi32>
      %13 = arith.cmpi sge, %10, %12 : vector<8x128xi32>
      %c0_10 = arith.constant 0 : index
      %c0_11 = arith.constant 0 : index
      %14 = vector.load %arg4[%c0_10, %c0_11] : memref<8x1xi32, #tpu.memory_space<vmem>>, vector<8x1xi32>
      %15 = vector.broadcast %14 : vector<8x1xi32> to vector<8x128xi32>
      %16 = arith.cmpi slt, %10, %15 : vector<8x128xi32>
      %17 = arith.andi %13, %16 : vector<8x128xi1>
      %18 = tpu.iota {dimensions = array<i32: 1>} : vector<128x128xi32>
      %c0_12 = arith.constant 0 : index
      %c0_13 = arith.constant 0 : index
      %19 = vector.load %arg2[%c0_12, %c0_13] : memref<128x1xi32, #tpu.memory_space<vmem>>, vector<128x1xi32>
      %20 = vector.broadcast %19 : vector<128x1xi32> to vector<128x128xi32>
      %21 = arith.cmpi eq, %20, %18 : vector<128x128xi32>
      %22 = arith.extui %17 : vector<8x128xi1> to vector<8x128xi32>
      %23 = arith.sitofp %22 : vector<8x128xi32> to vector<8x128xf32>
      %24 = arith.truncf %23 : vector<8x128xf32> to vector<8x128xbf16>
      %25 = arith.extui %21 : vector<128x128xi1> to vector<128x128xi32>
      %26 = arith.sitofp %25 : vector<128x128xi32> to vector<128x128xf32>
      %27 = arith.truncf %26 : vector<128x128xf32> to vector<128x128xbf16>
      %cst_14 = arith.constant dense<0.000000e+00> : vector<8x128xf32>
      %28 = tpu.matmul %24, %27, %cst_14 {dimension_numbers = #tpu.dot_dimension_numbers<[1], [0], [0], [1], [0, 0, 1, 1], [], []>} : vector<8x128xbf16>, vector<128x128xbf16>, vector<8x128xf32> -> vector<8x128xf32>
      %29 = arith.truncf %28 : vector<8x128xf32> to vector<8x128xbf16>
      %c0_15 = arith.constant 0 : index
      %c0_16 = arith.constant 0 : index
      %30 = vector.load %arg8[%c0_15, %c0_16] : memref<8x128xbf16, #tpu.memory_space<vmem>>, vector<8x128xbf16>
      tpu.vector_store %arg8[%c0_15, %c0_16], %29 {strides = array<i32>} : memref<8x128xbf16, #tpu.memory_space<vmem>>, vector<8x128xbf16>,
    } else {
    }
    %c0 = arith.constant 0 : index
    %c0_1 = arith.constant 0 : index
    %3 = vector.load %arg8[%c0, %c0_1] : memref<8x128xbf16, #tpu.memory_space<vmem>>, vector<8x128xbf16>
    %c0_2 = arith.constant 0 : index
    %c0_3 = arith.constant 0 : index
    %4 = vector.load %arg6[%c0_2, %c0_3] : memref<128x128xbf16, #tpu.memory_space<vmem>>, vector<128x128xbf16>
    %cst = arith.constant dense<0.000000e+00> : vector<8x128xf32>
    %5 = tpu.matmul %3, %4, %cst {dimension_numbers = #tpu.dot_dimension_numbers<[1], [0], [0], [1], [0, 0, 1, 1], [], []>} : vector<8x128xbf16>, vector<128x128xbf16>, vector<8x128xf32> -> vector<8x128xf32>
    %c0_4 = arith.constant 0 : index
    %c0_5 = arith.constant 0 : index
    %6 = vector.load %arg5[%c0_4, %c0_5] : memref<8x1xf32, #tpu.memory_space<vmem>>, vector<8x1xf32>
    %7 = vector.broadcast %6 : vector<8x1xf32> to vector<8x128xf32>
    %8 = arith.mulf %5, %7 : vector<8x128xf32>
    %c0_6 = arith.constant 0 : index
    %c0_7 = arith.constant 0 : index
    %9 = vector.load %arg7[%c0_6, %c0_7] : memref<8x128xf32, #tpu.memory_space<vmem>>, vector<8x128xf32>
    tpu.vector_store %arg7[%c0_6, %c0_7], %8 {strides = array<i32>} : memref<8x128xf32, #tpu.memory_space<vmem>>, vector<8x128xf32>,
    return
  }
  func.func @transform_0(%arg0: i32, %arg1: i32) -> (i32, i32) {
    %c0_i32 = arith.constant 0 : i32
    %c0_i32_0 = arith.constant 0 : i32
    %c0_i32_1 = arith.constant 0 : i32
    return %c0_i32, %c0_i32_0 : i32, i32
  }
  func.func @transform_1(%arg0: i32, %arg1: i32) -> (i32, i32) {
    %c0_i32 = arith.constant 0 : i32
    %c0_i32_0 = arith.constant 0 : i32
    return %arg0, %c0_i32 : i32, i32
  }
  func.func @transform_2(%arg0: i32, %arg1: i32) -> (i32, i32) {
    %c0_i32 = arith.constant 0 : i32
    %c0_i32_0 = arith.constant 0 : i32
    return %arg0, %c0_i32 : i32, i32
  }
  func.func @transform_3(%arg0: i32, %arg1: i32) -> (i32, i32) {
    %c0_i32 = arith.constant 0 : i32
    %c0_i32_0 = arith.constant 0 : i32
    return %arg0, %c0_i32 : i32, i32
  }
  func.func @transform_4(%arg0: i32, %arg1: i32) -> (i32, i32) {
    %c0_i32 = arith.constant 0 : i32
    %c0_i32_0 = arith.constant 0 : i32
    return %c0_i32, %arg1 : i32, i32
  }
  func.func @transform_5(%arg0: i32, %arg1: i32) -> (i32, i32) {
    %c0_i32 = arith.constant 0 : i32
    return %arg0, %arg1 : i32, i32
  }
}

</mosaic_0001>

<llo_original>
// kernel: tpu_custom_call.1
$region0: #{tpu_custom_call.1}
  #allocation0 [shape = 'u32[]', space=smem, size = 0x4, offset = 0x4, fixed_abs, tag = 'smem constant byte address 0x4 - core index']
  #allocation1 [shape = 'u32[144,128]{1,0:T(1,128)}', space=vmem, size = 0x12000, scoped, tag = 'internal scratch']
  #allocation2 [shape = 'bf16[8,128]{1,0:T(8,128)(2,1)}', space=vmem, size = 0x800, scoped, tag = 'scratch operand']
  %s0 = inlined_call_operand.vmem [shape: s32[128,1], index: 0, kind: input, shape index: {}]
  %s1 = inlined_call_operand.vmem [shape: s32[8,1], index: 1, kind: input, shape index: {}]
  %s2 = inlined_call_operand.vmem [shape: s32[8,1], index: 2, kind: input, shape index: {}]
  %s3 = inlined_call_operand.vmem [shape: f32[8,1], index: 3, kind: input, shape index: {}]
  %s4 = inlined_call_operand.vmem [shape: bf16[128,128], index: 4, kind: input, shape index: {}]
  %s5 = inlined_call_operand.hbm [shape: f32[8,128], index: 5, kind: output, shape index: {}]
  %s6 = sld [smem:[#allocation0]]
  $region34: #{tpu_custom_call.1} parent=0
    _
  %s8 = ssub.s32 1, %s6
  %s9 = scalar_select 0, %s8, %s6
  $region1: #{tpu_custom_call.1} parent=0
    #allocation3 [shape = 'u8[4096]{0}', space=vmem, size = 0x1000, scoped, tag = 'output window, operand 0, single buffered']
    #allocation4 [shape = 's32[1]{0}', space=sflag, size = 0x4, scoped, tag = 'scoped memory for tpu_custom_call.1']
    %10 = vsyncpa [#allocation4], 0
    // Predicated region
    $region2: #{tpu_custom_call.1} parent=1 // pred_check
      _
    $region3: #{tpu_custom_call.1} parent=1 // pred_check_branch
      %12 = sbr.rel (0) target = $region5
    $region4: #{tpu_custom_call.1} parent=1 // pred_region
      _
    $region5: #{tpu_custom_call.1} parent=1 // pred_fallthru
      _
    // Predicated region
    $region6: #{tpu_custom_call.1} parent=1 // pred_check
      _
    $region7: #{tpu_custom_call.1} parent=1 // pred_check_branch
      %14 = sbr.rel (0) target = $region9
    $region8: #{tpu_custom_call.1} parent=1 // pred_region
      _
    $region9: #{tpu_custom_call.1} parent=1 // pred_fallthru
      _
    // Predicated region
    $region10: #{tpu_custom_call.1} parent=1 // pred_check
      _
    $region11: #{tpu_custom_call.1} parent=1 // pred_check_branch
      %16 = sbr.rel (0) target = $region13
    $region12: #{tpu_custom_call.1} parent=1 // pred_region
      _
    $region13: #{tpu_custom_call.1} parent=1 // pred_fallthru
      _
    // Predicated region
    $region14: #{tpu_custom_call.1} parent=1 // pred_check
      _
    $region15: #{tpu_custom_call.1} parent=1 // pred_check_branch
      %18 = sbr.rel (0) target = $region17
    $region16: #{tpu_custom_call.1} parent=1 // pred_region
      _
    $region17: #{tpu_custom_call.1} parent=1 // pred_fallthru
      _
    // Predicated region
    $region18: #{tpu_custom_call.1} parent=1 // pred_check
      _
    $region19: #{tpu_custom_call.1} parent=1 // pred_check_branch
      %20 = sbr.rel (0) target = $region21
    $region20: #{tpu_custom_call.1} parent=1 // pred_region
      _
    $region21: #{tpu_custom_call.1} parent=1 // pred_fallthru
      _
    %p22 = scmp.eq.s32.totalorder 0, 0
    // Predicated region
    $region22: #{tpu_custom_call.1} parent=1 // pred_check
      %p23 = pneg %p22
    $region23: #{tpu_custom_call.1} parent=1 // pred_check_branch
      %25 = sbr.rel (%p23) target = $region25
    $region24: #{tpu_custom_call.1} parent=1 // pred_region
      %v26 = vlaneseq
      %v27 = vand.u32 %v26, 127
      %v28 = vld [vmem:[%s1] sm:$0xff]
      %29 = vset.pattern.permute.xlu0 0
      %30 = vperm.xlu0 %29, %v28
      %v31 = vpop.permute.xlu0 %30
      %vm32 = vcmp.ge.s32.totalorder %v27, %v31
      %v33 = vld [vmem:[%s2] sm:$0xff]
      %34 = vset.pattern.permute.xlu0 0
      %35 = vperm.xlu0 %34, %v33
      %v36 = vpop.permute.xlu0 %35
      %vm37 = vcmp.lt.s32.totalorder %v27, %v36
      %vm38 = vmand %vm32, %vm37
      %v39 = vld [vmem:[%s0] sm:$0xff]
      %v40 = vld [vmem:[%s0 + $0x8] sm:$0xff]
      %v41 = vld [vmem:[%s0 + $0x10] sm:$0xff]
      %v42 = vld [vmem:[%s0 + $0x18] sm:$0xff]
      %v43 = vld [vmem:[%s0 + $0x20] sm:$0xff]
      %v44 = vld [vmem:[%s0 + $0x28] sm:$0xff]
      %v45 = vld [vmem:[%s0 + $0x30] sm:$0xff]
      %v46 = vld [vmem:[%s0 + $0x38] sm:$0xff]
      %v47 = vld [vmem:[%s0 + $0x40] sm:$0xff]
      %v48 = vld [vmem:[%s0 + $0x48] sm:$0xff]
      %v49 = vld [vmem:[%s0 + $0x50] sm:$0xff]
      %v50 = vld [vmem:[%s0 + $0x58] sm:$0xff]
      %v51 = vld [vmem:[%s0 + $0x60] sm:$0xff]
      %v52 = vld [vmem:[%s0 + $0x68] sm:$0xff]
      %v53 = vld [vmem:[%s0 + $0x70] sm:$0xff]
      %v54 = vld [vmem:[%s0 + $0x78] sm:$0xff]
      %55 = vset.pattern.permute.xlu0 0
      %56 = vperm.xlu0 %55, %v39
      %v57 = vpop.permute.xlu0 %56
      %58 = vset.pattern.permute.xlu0 0
      %59 = vperm.xlu0 %58, %v40
      %v60 = vpop.permute.xlu0 %59
      %61 = vset.pattern.permute.xlu0 0
      %62 = vperm.xlu0 %61, %v41
      %v63 = vpop.permute.xlu0 %62
      %64 = vset.pattern.permute.xlu0 0
      %65 = vperm.xlu0 %64, %v42
      %v66 = vpop.permute.xlu0 %65
      %67 = vset.pattern.permute.xlu0 0
      %68 = vperm.xlu0 %67, %v43
      %v69 = vpop.permute.xlu0 %68
      %70 = vset.pattern.permute.xlu0 0
      %71 = vperm.xlu0 %70, %v44
      %v72 = vpop.permute.xlu0 %71
      %73 = vset.pattern.permute.xlu0 0
      %74 = vperm.xlu0 %73, %v45
      %v75 = vpop.permute.xlu0 %74
      %76 = vset.pattern.permute.xlu0 0
      %77 = vperm.xlu0 %76, %v46
      %v78 = vpop.permute.xlu0 %77
      %79 = vset.pattern.permute.xlu0 0
      %80 = vperm.xlu0 %79, %v47
      %v81 = vpop.permute.xlu0 %80
      %82 = vset.pattern.permute.xlu0 0
      %83 = vperm.xlu0 %82, %v48
      %v84 = vpop.permute.xlu0 %83
      %85 = vset.pattern.permute.xlu0 0
      %86 = vperm.xlu0 %85, %v49
      %v87 = vpop.permute.xlu0 %86
      %88 = vset.pattern.permute.xlu0 0
      %89 = vperm.xlu0 %88, %v50
      %v90 = vpop.permute.xlu0 %89
      %91 = vset.pattern.permute.xlu0 0
      %92 = vperm.xlu0 %91, %v51
      %v93 = vpop.permute.xlu0 %92
      %94 = vset.pattern.permute.xlu0 0
      %95 = vperm.xlu0 %94, %v52
      %v96 = vpop.permute.xlu0 %95
      %97 = vset.pattern.permute.xlu0 0
      %98 = vperm.xlu0 %97, %v53
      %v99 = vpop.permute.xlu0 %98
      %100 = vset.pattern.permute.xlu0 0
      %101 = vperm.xlu0 %100, %v54
      %v102 = vpop.permute.xlu0 %101
      %vm103 = vcmp.eq.s32.totalorder %v57, %v27
      %vm104 = vcmp.eq.s32.totalorder %v60, %v27
      %vm105 = vcmp.eq.s32.totalorder %v63, %v27
      %vm106 = vcmp.eq.s32.totalorder %v66, %v27
      %vm107 = vcmp.eq.s32.totalorder %v69, %v27
      %vm108 = vcmp.eq.s32.totalorder %v72, %v27
      %vm109 = vcmp.eq.s32.totalorder %v75, %v27
      %vm110 = vcmp.eq.s32.totalorder %v78, %v27
      %vm111 = vcmp.eq.s32.totalorder %v81, %v27
      %vm112 = vcmp.eq.s32.totalorder %v84, %v27
      %vm113 = vcmp.eq.s32.totalorder %v87, %v27
      %vm114 = vcmp.eq.s32.totalorder %v90, %v27
      %vm115 = vcmp.eq.s32.totalorder %v93, %v27
      %vm116 = vcmp.eq.s32.totalorder %v96, %v27
      %vm117 = vcmp.eq.s32.totalorder %v99, %v27
      %vm118 = vcmp.eq.s32.totalorder %v102, %v27
      %v119 = vsel %vm38, 1, 0
      %v120 = vcvt.s32.f32 %v119
      %v121 = vpack.c.bf16 %v120, %v120
      %v122 = vsel %vm103, 1, 0
      %v123 = vsel %vm104, 1, 0
      %v124 = vsel %vm105, 1, 0
      %v125 = vsel %vm106, 1, 0
      %v126 = vsel %vm107, 1, 0
      %v127 = vsel %vm108, 1, 0
      %v128 = vsel %vm109, 1, 0
      %v129 = vsel %vm110, 1, 0
      %v130 = vsel %vm111, 1, 0
      %v131 = vsel %vm112, 1, 0
      %v132 = vsel %vm113, 1, 0
      %v133 = vsel %vm114, 1, 0
      %v134 = vsel %vm115, 1, 0
      %v135 = vsel %vm116, 1, 0
      %v136 = vsel %vm117, 1, 0
      %v137 = vsel %vm118, 1, 0
      %v138 = vcvt.s32.f32 %v122
      %v139 = vcvt.s32.f32 %v123
      %v140 = vcvt.s32.f32 %v124
      %v141 = vcvt.s32.f32 %v125
      %v142 = vcvt.s32.f32 %v126
      %v143 = vcvt.s32.f32 %v127
      %v144 = vcvt.s32.f32 %v128
      %v145 = vcvt.s32.f32 %v129
      %v146 = vcvt.s32.f32 %v130
      %v147 = vcvt.s32.f32 %v131
      %v148 = vcvt.s32.f32 %v132
      %v149 = vcvt.s32.f32 %v133
      %v150 = vcvt.s32.f32 %v134
      %v151 = vcvt.s32.f32 %v135
      %v152 = vcvt.s32.f32 %v136
      %v153 = vcvt.s32.f32 %v137
      %v154 = vpack.c.bf16 %v139, %v138
      %v155 = vpack.c.bf16 %v141, %v140
      %v156 = vpack.c.bf16 %v143, %v142
      %v157 = vpack.c.bf16 %v145, %v144
      %v158 = vpack.c.bf16 %v147, %v146
      %v159 = vpack.c.bf16 %v149, %v148
      %v160 = vpack.c.bf16 %v151, %v150
      %v161 = vpack.c.bf16 %v153, %v152
      %162 = vmatprep.subr.bf16.mxu0 0
      %163 = vmatpush1.bf16.msra.mxu0 %v154
      %164 = vmatprep.subr.bf16.mxu0 0
      %165 = vmatpush1.bf16.msra.mxu0 %v155
      %166 = vmatprep.subr.bf16.mxu0 0
      %167 = vmatpush1.bf16.msra.mxu0 %v156
      %168 = vmatprep.subr.bf16.mxu0 0
      %169 = vmatpush1.bf16.msra.mxu0 %v157
      %170 = vmatprep.subr.bf16.mxu0 0
      %171 = vmatpush1.bf16.msra.mxu0 %v158
      %172 = vmatprep.subr.bf16.mxu0 0
      %173 = vmatpush1.bf16.msra.mxu0 %v159
      %174 = vmatprep.subr.bf16.mxu0 0
      %175 = vmatpush1.bf16.msra.mxu0 %v160
      %176 = vmatprep.subr.bf16.mxu0 0
      %177 = vmatpush1.bf16.msra.mxu0 %v161
      %178 = vmatprep.subr.bf16.mxu0 0
      %179 = vmatpush1.bf16.msra.mxu0 0
      %180 = vmatprep.subr.bf16.mxu0 0
      %181 = vmatpush1.bf16.msra.mxu0 0
      %182 = vmatprep.subr.bf16.mxu0 0
      %183 = vmatpush1.bf16.msra.mxu0 0
      %184 = vmatprep.subr.bf16.mxu0 0
      %185 = vmatpush1.bf16.msra.mxu0 0
      %186 = vmatprep.subr.bf16.mxu0 0
      %187 = vmatpush1.bf16.msra.mxu0 0
      %188 = vmatprep.subr.bf16.mxu0 0
      %189 = vmatpush1.bf16.msra.mxu0 0
      %190 = vmatprep.subr.bf16.mxu0 0
      %191 = vmatpush1.bf16.msra.mxu0 0
      %192 = vmatprep.subr.bf16.mxu0 0
      %193 = vmatpush1.bf16.msra.mxu0 0
      %194 = vmatprep.mubr.bf16.mxu0 0
      %195 = vmatmul.mubr.bf16.gmra.mrb[0].mxu0 %v121
      %v196 = vpop.f32.mrb[0].mxu0
      %v197 = vadd.f32 0.0, %v196
      %v198 = vpop.f32.mrb[0].mxu0
      %v199 = vpop.f32.mrb[0].mxu0
      %v200 = vpop.f32.mrb[0].mxu0
      %201 = vdwg.mxu0
      %v202 = vpack.c.bf16 %v197, %v197
      %203 = vst [vmem:[#allocation2] sm:$0xf] %v202
    $region25: #{tpu_custom_call.1} parent=1 // pred_fallthru
      _
    %v204 = vld [vmem:[#allocation2] sm:$0xf]
    %v205 = vld [vmem:[%s4] sm:$0xf]
    %v206 = vld [vmem:[%s4 + $0x4] sm:$0xf]
    %v207 = vld [vmem:[%s4 + $0x8] sm:$0xf]
    %v208 = vld [vmem:[%s4 + $0xc] sm:$0xf]
    %v209 = vld [vmem:[%s4 + $0x10] sm:$0xf]
    %v210 = vld [vmem:[%s4 + $0x14] sm:$0xf]
    %v211 = vld [vmem:[%s4 + $0x18] sm:$0xf]
    %v212 = vld [vmem:[%s4 + $0x1c] sm:$0xf]
    %v213 = vld [vmem:[%s4 + $0x20] sm:$0xf]
    %v214 = vld [vmem:[%s4 + $0x24] sm:$0xf]
    %v215 = vld [vmem:[%s4 + $0x28] sm:$0xf]
    %v216 = vld [vmem:[%s4 + $0x2c] sm:$0xf]
    %v217 = vld [vmem:[%s4 + $0x30] sm:$0xf]
    %v218 = vld [vmem:[%s4 + $0x34] sm:$0xf]
    %v219 = vld [vmem:[%s4 + $0x38] sm:$0xf]
    %v220 = vld [vmem:[%s4 + $0x3c] sm:$0xf]
    %v237 = vunpack.c.l.b16 %v205
    %v238 = vunpack.c.l.b16 %v206
    %v239 = vunpack.c.l.b16 %v207
    %v240 = vunpack.c.l.b16 %v208
    %v241 = vunpack.c.l.b16 %v209
    %v242 = vunpack.c.l.b16 %v210
    %v243 = vunpack.c.l.b16 %v211
    %v244 = vunpack.c.l.b16 %v212
    %v245 = vunpack.c.l.b16 %v213
    %v246 = vunpack.c.l.b16 %v214
    %v247 = vunpack.c.l.b16 %v215
    %v248 = vunpack.c.l.b16 %v216
    %v249 = vunpack.c.l.b16 %v217
    %v250 = vunpack.c.l.b16 %v218
    %v251 = vunpack.c.l.b16 %v219
    %v252 = vunpack.c.l.b16 %v220
    %v253 = vpack.c.b16 %v238, %v237
    %v254 = vpack.c.b16 %v240, %v239
    %v255 = vpack.c.b16 %v242, %v241
    %v256 = vpack.c.b16 %v244, %v243
    %v257 = vpack.c.b16 %v246, %v245
    %v258 = vpack.c.b16 %v248, %v247
    %v259 = vpack.c.b16 %v250, %v249
    %v260 = vpack.c.b16 %v252, %v251
    %269 = vmatprep.subr.bf16.mxu0 0
    %270 = vmatpush1.bf16.msra.mxu0 %v253
    %271 = vmatprep.subr.bf16.mxu0 0
    %272 = vmatpush1.bf16.msra.mxu0 %v254
    %273 = vmatprep.subr.bf16.mxu0 0
    %274 = vmatpush1.bf16.msra.mxu0 %v255
    %275 = vmatprep.subr.bf16.mxu0 0
    %276 = vmatpush1.bf16.msra.mxu0 %v256
    %277 = vmatprep.subr.bf16.mxu0 0
    %278 = vmatpush1.bf16.msra.mxu0 %v257
    %279 = vmatprep.subr.bf16.mxu0 0
    %280 = vmatpush1.bf16.msra.mxu0 %v258
    %281 = vmatprep.subr.bf16.mxu0 0
    %282 = vmatpush1.bf16.msra.mxu0 %v259
    %283 = vmatprep.subr.bf16.mxu0 0
    %284 = vmatpush1.bf16.msra.mxu0 %v260
    %285 = vmatprep.subr.bf16.mxu0 0
    %286 = vmatpush1.bf16.msra.mxu0 0
    %287 = vmatprep.subr.bf16.mxu0 0
    %288 = vmatpush1.bf16.msra.mxu0 0
    %289 = vmatprep.subr.bf16.mxu0 0
    %290 = vmatpush1.bf16.msra.mxu0 0
    %291 = vmatprep.subr.bf16.mxu0 0
    %292 = vmatpush1.bf16.msra.mxu0 0
    %293 = vmatprep.subr.bf16.mxu0 0
    %294 = vmatpush1.bf16.msra.mxu0 0
    %295 = vmatprep.subr.bf16.mxu0 0
    %296 = vmatpush1.bf16.msra.mxu0 0
    %297 = vmatprep.subr.bf16.mxu0 0
    %298 = vmatpush1.bf16.msra.mxu0 0
    %299 = vmatprep.subr.bf16.mxu0 0
    %300 = vmatpush1.bf16.msra.mxu0 0
    %301 = vmatprep.mubr.bf16.mxu0 0
    %302 = vmatmul.mubr.bf16.gmra.mrb[0].mxu0 %v204
    %v303 = vpop.f32.mrb[0].mxu0
    %v304 = vadd.f32 0.0, %v303
    %v305 = vpop.f32.mrb[0].mxu0
    %v306 = vpop.f32.mrb[0].mxu0
    %v307 = vpop.f32.mrb[0].mxu0
    %308 = vdwg.mxu0
    %v309 = vld [vmem:[%s3] sm:$0xff]
    %311 = vset.pattern.permute.xlu0 0
    %312 = vperm.xlu0 %311, %v309
    %v313 = vpop.permute.xlu0 %312
    %v315 = vmul.f32 %v304, %v313
    %316 = vst [vmem:[#allocation3] sm:$0xff] %v315
    // Predicated region
    $region26: #{tpu_custom_call.1} parent=1 // pred_check
      _
    $region27: #{tpu_custom_call.1} parent=1 // pred_check_branch
      %318 = sbr.rel (0) target = $region29
    $region28: #{tpu_custom_call.1} parent=1 // pred_region
      %s320 = ssub.s32 128, 128
      %321 = vsyncadd [#allocation4], %s320
      %s323 = sshll.u32 [#allocation3], 4
      %s324 = int_to_ptr.vmem [resolvable:$true] %s323
      %326 = dma.vmem_to_hbm [thread:$0]  %s324, 128, %s5, [#allocation4]
    $region29: #{tpu_custom_call.1} parent=1 // pred_fallthru
      _
    // Predicated region
    $region30: #{tpu_custom_call.1} parent=1 // pred_check
      _
    $region31: #{tpu_custom_call.1} parent=1 // pred_check_branch
      %328 = sbr.rel (0) target = $region33
    $region32: #{tpu_custom_call.1} parent=1 // pred_region
      %329 = dma.done [#allocation4], 128
    $region33: #{tpu_custom_call.1} parent=1 // pred_fallthru
      _
    %330 = vsyncpa [#allocation4], 1

</llo_original>
